<compile_context>
chip_gen: v7x
topology: tpu7x:2x2x1
jax: 0.10.0
libtpu: 0.0.40
codegen_flags: <defaults>
</compile_context>

<pallas_src>
import functools

import jax
import jax.numpy as jnp
from jax.experimental import pallas as pl
from jax.experimental.pallas import tpu as pltpu


def _gc_aggregate_kernel(a_ref, x_ref, dn_ref, b_ref, out_ref, *, activation):
    # in_feats > out_feats path: x = (feat * src_norm) @ W precomputed once in
    # the wrapper.  Per step: one (tm, N) @ (N, Fout) MXU matmul.
    rst = jnp.dot(a_ref[...], x_ref[...], preferred_element_type=jnp.float32)
    rst = rst * dn_ref[...] + b_ref[...]            # dst norm + bias (f32 VPU)
    if activation is not None:
        rst = activation(rst)
    out_ref[...] = rst.astype(out_ref.dtype)


def _gc_aggregate_project_kernel(a_ref, h_ref, w_ref, dn_ref, b_ref, out_ref,
                                 *, activation):
    # in_feats <= out_feats path: aggregate first (tile-local), then project.
    agg = jnp.dot(a_ref[...], h_ref[...], preferred_element_type=jnp.float32)
    rst = jnp.dot(agg, w_ref[...], preferred_element_type=jnp.float32)
    rst = rst * dn_ref[...] + b_ref[...]
    if activation is not None:
        rst = activation(rst)
    out_ref[...] = rst.astype(out_ref.dtype)


def graph_conv(adj, feat, weight, bias=None, *, norm=True, activation=None,
               deg=None, tm=256, adj_dtype=jnp.bfloat16, mxu_dtype=jnp.bfloat16,
               adj_buffers=2, vmem_limit_bytes=None):
    """GraphConv forward on a dense adjacency matrix.

    adj    : (N, N), adj[dst, src] != 0 for an edge src -> dst.  Pass it
             pre-cast to `adj_dtype` (bf16) and cache it to avoid a per-call
             cast/copy of the N^2 matrix.
    feat   : (N, in_feats)
    weight : (in_feats, out_feats)
    bias   : (out_feats,) or None
    deg    : optional cached in-degrees (N,) -- == graph.in_degrees().
    """
    N, fin = feat.shape
    fin_w, fout = weight.shape
    assert fin == fin_w and adj.shape == (N, N)

    tm = min(tm, N)
    assert N % tm == 0, "number of nodes must be divisible by the row tile"

    out_dtype = feat.dtype
    feat = feat.astype(jnp.float32)
    weight = weight.astype(jnp.float32)

    # ---- one-time (per-call, cacheable) precompute; hoisted out of the grid.
    if norm:
        if deg is None:
            # == graph.in_degrees(): count incoming edges (works for the
            # weighted u_mul_e variant too, where adj carries edge weights).
            deg = jnp.sum((adj != 0).astype(jnp.float32), axis=1)
        inv_norm = jax.lax.rsqrt(
            jnp.maximum(deg.astype(jnp.float32).reshape(N, 1), 1.0))
        h = feat * inv_norm                     # src normalization, once
        dst_norm = inv_norm
    else:
        h = feat
        dst_norm = jnp.ones((N, 1), jnp.float32)

    if bias is None:
        bias = jnp.zeros((fout,), jnp.float32)
    bias2d = jnp.reshape(bias, (1, fout)).astype(jnp.float32)

    if adj.dtype != adj_dtype:
        # Caller should cache the bf16 adjacency; this cast is the fallback.
        adj = adj.astype(adj_dtype)

    adj_spec_kwargs = {}
    if adj_buffers != 2:
        adj_spec_kwargs["pipeline_mode"] = pl.Buffered(adj_buffers)
    adj_spec = pl.BlockSpec((tm, N), lambda i: (i, 0), **adj_spec_kwargs)

    project_first = fin > fout                  # mirrors the PyTorch branch
    if project_first:
        # Hoisted once: (feat * norm) @ W -> (N, Fout); tiny XLA matmul.
        x = jnp.dot(h, weight, preferred_element_type=jnp.float32,
                    precision=jax.lax.Precision.HIGHEST).astype(mxu_dtype)
        kernel = functools.partial(_gc_aggregate_kernel, activation=activation)
        in_specs = [
            adj_spec,                                     # (tm, N) slab, streamed
            pl.BlockSpec((N, fout), lambda i: (0, 0)),    # x, VMEM resident
            pl.BlockSpec((tm, 1), lambda i: (i, 0)),      # dst-norm row tile
            pl.BlockSpec((1, fout), lambda i: (0, 0)),    # bias, resident
        ]
        args = (adj, x, dst_norm, bias2d)
    else:
        h_m = h.astype(mxu_dtype)
        kernel = functools.partial(_gc_aggregate_project_kernel,
                                   activation=activation)
        in_specs = [
            adj_spec,                                     # (tm, N) slab, streamed
            pl.BlockSpec((N, fin), lambda i: (0, 0)),     # normalized feat
            pl.BlockSpec((fin, fout), lambda i: (0, 0)),  # weight, resident
            pl.BlockSpec((tm, 1), lambda i: (i, 0)),      # dst-norm row tile
            pl.BlockSpec((1, fout), lambda i: (0, 0)),    # bias, resident
        ]
        args = (adj, h_m, weight, dst_norm, bias2d)

    # Note: out tile is (tm, fout) with fout < 128 lanes (masked stores); the
    # absolute write-back bytes are tiny vs. the adjacency stream, so we keep
    # the natural module output shape.
    return pl.pallas_call(
        kernel,
        out_shape=jax.ShapeDtypeStruct((N, fout), out_dtype),
        grid=(N // tm,),
        in_specs=in_specs,
        out_specs=pl.BlockSpec((tm, fout), lambda i: (i, 0)),
        compiler_params=pltpu.CompilerParams(
            dimension_semantics=("parallel",),
            vmem_limit_bytes=vmem_limit_bytes),
    )(*args)


def _reference(adj, feat, weight, bias, norm=True, activation=None):
    """Pure-JAX f32 reference of the module's forward."""
    with jax.default_matmul_precision("float32"):
        adj = adj.astype(jnp.float32)
        if norm:
            deg = jnp.maximum(
                jnp.sum((adj != 0).astype(jnp.float32), axis=1), 1.0)
            nrm = deg ** -0.5
            feat = feat * nrm[:, None]
        if weight.shape[0] > weight.shape[1]:
            rst = adj @ (feat @ weight)
        else:
            rst = (adj @ feat) @ weight
        if norm:
            rst = rst * nrm[:, None]
        if bias is not None:
            rst = rst + bias
        if activation is not None:
            rst = activation(rst)
        return rst


if __name__ == "__main__":
    key = jax.random.PRNGKey(0)
    k_adj, k_f1, k_w1, k_b1, k_f2, k_w2, k_b2 = jax.random.split(key, 7)

    N = 256
    # Random directed 0/1 graph, stored directly in bf16 (exactly representable)
    # so the kernel's dominant HBM stream is half-width; `deg` is cached graph
    # metadata (== graph.in_degrees()), computed once per graph.
    adj_bf16 = (jax.random.uniform(k_adj, (N, N)) < 0.1).astype(jnp.bfloat16)
    deg = jnp.sum((adj_bf16 != 0).astype(jnp.float32), axis=1)

    # Branch 1: in_feats (32) > out_feats (16) -> project first, then aggregate.
    fin, fout = 32, 16
    feat = jax.random.normal(k_f1, (N, fin), jnp.float32)
    w = jax.random.normal(k_w1, (fin, fout), jnp.float32) / jnp.sqrt(fin)
    b = 0.1 * jax.random.normal(k_b1, (fout,), jnp.float32)
    out = jax.block_until_ready(graph_conv(adj_bf16, feat, w, b, deg=deg))
    ref = _reference(adj_bf16, feat, w, b)
    assert out.shape == (N, fout)
    err1 = float(jnp.max(jnp.abs(out - ref)))
    assert jnp.allclose(out, ref, atol=3e-3, rtol=3e-3), (
        "branch1 mismatch, max abs err = %g" % err1)

    # Branch 2: in_feats (16) <= out_feats (32) -> aggregate first, then
    # project; also exercises the optional activation.
    fin2, fout2 = 16, 32
    feat2 = jax.random.normal(k_f2, (N, fin2), jnp.float32)
    w2 = jax.random.normal(k_w2, (fin2, fout2), jnp.float32) / jnp.sqrt(fin2)
    b2 = 0.1 * jax.random.normal(k_b2, (fout2,), jnp.float32)
    out2 = jax.block_until_ready(
        graph_conv(adj_bf16, feat2, w2, b2, deg=deg, activation=jax.nn.relu))
    ref2 = _reference(adj_bf16, feat2, w2, b2, activation=jax.nn.relu)
    assert out2.shape == (N, fout2)
    err2 = float(jnp.max(jnp.abs(out2 - ref2)))
    assert jnp.allclose(out2, ref2, atol=3e-3, rtol=3e-3), (
        "branch2 mismatch, max abs err = %g" % err2)

    print("KERNEL_OK")
</pallas_src>

<mosaic_0001>
module attributes {stable_mosaic.version = 11 : i64} {
  func.func @_gc_aggregate_kernel(%arg0: i32, %arg1: memref<256x256xbf16, #tpu.memory_space<vmem>>, %arg2: memref<256x16xbf16, #tpu.memory_space<vmem>>, %arg3: memref<256x1xf32, #tpu.memory_space<vmem>>, %arg4: memref<1x16xf32, #tpu.memory_space<vmem>>, %arg5: memref<256x16xf32, #tpu.memory_space<vmem>>) attributes {dimension_semantics = [#tpu.dimension_semantics<parallel>], iteration_bounds = array<i64: 1>, scalar_prefetch = 0 : i64, scratch_operands = 0 : i64, tpu.core_type = #tpu.core_type<tc>, window_params = [{transform_indices = @transform_0, window_bounds = array<i64: 256, 256>}, {pipeline_mode = #tpu.pipeline_mode<synchronous>, transform_indices = @transform_1, window_bounds = array<i64: 256, 16>}, {transform_indices = @transform_2, window_bounds = array<i64: 256, 1>}, {pipeline_mode = #tpu.pipeline_mode<synchronous>, transform_indices = @transform_3, window_bounds = array<i64: 1, 16>}, {transform_indices = @transform_4, window_bounds = array<i64: 256, 16>}]} {
    %c0 = arith.constant 0 : index
    %c0_0 = arith.constant 0 : index
    %0 = vector.load %arg1[%c0, %c0_0] : memref<256x256xbf16, #tpu.memory_space<vmem>>, vector<256x256xbf16>
    %c0_1 = arith.constant 0 : index
    %c0_2 = arith.constant 0 : index
    %1 = vector.load %arg2[%c0_1, %c0_2] : memref<256x16xbf16, #tpu.memory_space<vmem>>, vector<256x16xbf16>
    %cst = arith.constant dense<0.000000e+00> : vector<256x16xf32>
    %2 = tpu.matmul %0, %1, %cst {dimension_numbers = #tpu.dot_dimension_numbers<[1], [0], [0], [1], [0, 0, 1, 1], [], []>} : vector<256x256xbf16>, vector<256x16xbf16>, vector<256x16xf32> -> vector<256x16xf32>
    %c0_3 = arith.constant 0 : index
    %c0_4 = arith.constant 0 : index
    %3 = vector.load %arg3[%c0_3, %c0_4] : memref<256x1xf32, #tpu.memory_space<vmem>>, vector<256x1xf32>
    %4 = vector.broadcast %3 : vector<256x1xf32> to vector<256x16xf32>
    %5 = arith.mulf %2, %4 : vector<256x16xf32>
    %c0_5 = arith.constant 0 : index
    %c0_6 = arith.constant 0 : index
    %6 = vector.load %arg4[%c0_5, %c0_6] : memref<1x16xf32, #tpu.memory_space<vmem>>, vector<1x16xf32>
    %7 = vector.broadcast %6 : vector<1x16xf32> to vector<256x16xf32>
    %8 = arith.addf %5, %7 : vector<256x16xf32>
    %c0_7 = arith.constant 0 : index
    %c0_8 = arith.constant 0 : index
    %9 = vector.load %arg5[%c0_7, %c0_8] : memref<256x16xf32, #tpu.memory_space<vmem>>, vector<256x16xf32>
    tpu.vector_store %arg5[%c0_7, %c0_8], %8 {strides = array<i32>} : memref<256x16xf32, #tpu.memory_space<vmem>>, vector<256x16xf32>,
    return
  }
  func.func @transform_0(%arg0: i32) -> (i32, i32) {
    %c0_i32 = arith.constant 0 : i32
    %c0_i32_0 = arith.constant 0 : i32
    return %arg0, %c0_i32 : i32, i32
  }
  func.func @transform_1(%arg0: i32) -> (i32, i32) {
    %c0_i32 = arith.constant 0 : i32
    %c0_i32_0 = arith.constant 0 : i32
    %c0_i32_1 = arith.constant 0 : i32
    return %c0_i32, %c0_i32_0 : i32, i32
  }
  func.func @transform_2(%arg0: i32) -> (i32, i32) {
    %c0_i32 = arith.constant 0 : i32
    %c0_i32_0 = arith.constant 0 : i32
    return %arg0, %c0_i32 : i32, i32
  }
  func.func @transform_3(%arg0: i32) -> (i32, i32) {
    %c0_i32 = arith.constant 0 : i32
    %c0_i32_0 = arith.constant 0 : i32
    %c0_i32_1 = arith.constant 0 : i32
    return %c0_i32, %c0_i32_0 : i32, i32
  }
  func.func @transform_4(%arg0: i32) -> (i32, i32) {
    %c0_i32 = arith.constant 0 : i32
    %c0_i32_0 = arith.constant 0 : i32
    return %arg0, %c0_i32 : i32, i32
  }
}

</mosaic_0001>

<llo_original>
// kernel: tpu_custom_call.1
$region0: #{tpu_custom_call.1}
  #allocation0 [shape = 'u32[]', space=smem, size = 0x4, offset = 0x4, fixed_abs, tag = 'smem constant byte address 0x4 - core index']
  #allocation1 [shape = 'u32[144,128]{1,0:T(1,128)}', space=vmem, size = 0x12000, scoped, tag = 'internal scratch']
  %s0 = inlined_call_operand.vmem [shape: bf16[256,256], index: 0, kind: input, shape index: {}]
  %s1 = inlined_call_operand.vmem [shape: bf16[256,16], index: 1, kind: input, shape index: {}]
  %s2 = inlined_call_operand.vmem [shape: f32[256,1], index: 2, kind: input, shape index: {}]
  %s3 = inlined_call_operand.vmem [shape: f32[1,16], index: 3, kind: input, shape index: {}]
  %s4 = inlined_call_operand.vmem [shape: f32[256,16], index: 4, kind: output, shape index: {}]
  %s5 = sld [smem:[#allocation0]]
  $region26: #{tpu_custom_call.1} parent=0
    _
  %s7 = ssub.s32 1, %s5
  %s8 = scalar_select 0, %s7, %s5
  // Predicated region
  $region2: #{tpu_custom_call.1} parent=0 // pred_check
    _
  $region3: #{tpu_custom_call.1} parent=0 // pred_check_branch
    %10 = sbr.rel (0) target = $region5
  $region4: #{tpu_custom_call.1} parent=0 // pred_region
    _
  $region5: #{tpu_custom_call.1} parent=0 // pred_fallthru
    _
  // Predicated region
  $region6: #{tpu_custom_call.1} parent=0 // pred_check
    _
  $region7: #{tpu_custom_call.1} parent=0 // pred_check_branch
    %12 = sbr.rel (0) target = $region9
  $region8: #{tpu_custom_call.1} parent=0 // pred_region
    _
  $region9: #{tpu_custom_call.1} parent=0 // pred_fallthru
    _
  // Predicated region
  $region10: #{tpu_custom_call.1} parent=0 // pred_check
    _
  $region11: #{tpu_custom_call.1} parent=0 // pred_check_branch
    %14 = sbr.rel (0) target = $region13
  $region12: #{tpu_custom_call.1} parent=0 // pred_region
    _
  $region13: #{tpu_custom_call.1} parent=0 // pred_fallthru
    _
  // Predicated region
  $region14: #{tpu_custom_call.1} parent=0 // pred_check
    _
  $region15: #{tpu_custom_call.1} parent=0 // pred_check_branch
    %16 = sbr.rel (0) target = $region17
  $region16: #{tpu_custom_call.1} parent=0 // pred_region
    _
  $region17: #{tpu_custom_call.1} parent=0 // pred_fallthru
    _
  %v18 = vld [vmem:[%s0] sm:$0xff]
  %v19 = vld [vmem:[%s0 + $0x8] sm:$0xff]
  %v20 = vld [vmem:[%s0 + $0x10] sm:$0xff]
  %v21 = vld [vmem:[%s0 + $0x18] sm:$0xff]
  %v22 = vld [vmem:[%s0 + $0x20] sm:$0xff]
  %v23 = vld [vmem:[%s0 + $0x28] sm:$0xff]
  %v24 = vld [vmem:[%s0 + $0x30] sm:$0xff]
  %v25 = vld [vmem:[%s0 + $0x38] sm:$0xff]
  %v26 = vld [vmem:[%s0 + $0x40] sm:$0xff]
  %v27 = vld [vmem:[%s0 + $0x48] sm:$0xff]
  %v28 = vld [vmem:[%s0 + $0x50] sm:$0xff]
  %v29 = vld [vmem:[%s0 + $0x58] sm:$0xff]
  %v30 = vld [vmem:[%s0 + $0x60] sm:$0xff]
  %v31 = vld [vmem:[%s0 + $0x68] sm:$0xff]
  %v32 = vld [vmem:[%s0 + $0x70] sm:$0xff]
  %v33 = vld [vmem:[%s0 + $0x78] sm:$0xff]
  %v34 = vld [vmem:[%s0 + $0x80] sm:$0xff]
  %v35 = vld [vmem:[%s0 + $0x88] sm:$0xff]
  %v36 = vld [vmem:[%s0 + $0x90] sm:$0xff]
  %v37 = vld [vmem:[%s0 + $0x98] sm:$0xff]
  %v38 = vld [vmem:[%s0 + $0xa0] sm:$0xff]
  %v39 = vld [vmem:[%s0 + $0xa8] sm:$0xff]
  %v40 = vld [vmem:[%s0 + $0xb0] sm:$0xff]
  %v41 = vld [vmem:[%s0 + $0xb8] sm:$0xff]
  %v42 = vld [vmem:[%s0 + $0xc0] sm:$0xff]
  %v43 = vld [vmem:[%s0 + $0xc8] sm:$0xff]
  %v44 = vld [vmem:[%s0 + $0xd0] sm:$0xff]
  %v45 = vld [vmem:[%s0 + $0xd8] sm:$0xff]
  %v46 = vld [vmem:[%s0 + $0xe0] sm:$0xff]
  %v47 = vld [vmem:[%s0 + $0xe8] sm:$0xff]
  %v48 = vld [vmem:[%s0 + $0xf0] sm:$0xff]
  %v49 = vld [vmem:[%s0 + $0xf8] sm:$0xff]
  %v50 = vld [vmem:[%s1] sm:$0xf]
  %v51 = vld [vmem:[%s1 + $0x4] sm:$0xf]
  %v52 = vld [vmem:[%s1 + $0x8] sm:$0xf]
  %v53 = vld [vmem:[%s1 + $0xc] sm:$0xf]
  %v54 = vld [vmem:[%s1 + $0x10] sm:$0xf]
  %v55 = vld [vmem:[%s1 + $0x14] sm:$0xf]
  %v56 = vld [vmem:[%s1 + $0x18] sm:$0xf]
  %v57 = vld [vmem:[%s1 + $0x1c] sm:$0xf]
  %v58 = vld [vmem:[%s1 + $0x20] sm:$0xf]
  %v59 = vld [vmem:[%s1 + $0x24] sm:$0xf]
  %v60 = vld [vmem:[%s1 + $0x28] sm:$0xf]
  %v61 = vld [vmem:[%s1 + $0x2c] sm:$0xf]
  %v62 = vld [vmem:[%s1 + $0x30] sm:$0xf]
  %v63 = vld [vmem:[%s1 + $0x34] sm:$0xf]
  %v64 = vld [vmem:[%s1 + $0x38] sm:$0xf]
  %v65 = vld [vmem:[%s1 + $0x3c] sm:$0xf]
  %v66 = vld [vmem:[%s1 + $0x40] sm:$0xf]
  %v67 = vld [vmem:[%s1 + $0x44] sm:$0xf]
  %v68 = vld [vmem:[%s1 + $0x48] sm:$0xf]
  %v69 = vld [vmem:[%s1 + $0x4c] sm:$0xf]
  %v70 = vld [vmem:[%s1 + $0x50] sm:$0xf]
  %v71 = vld [vmem:[%s1 + $0x54] sm:$0xf]
  %v72 = vld [vmem:[%s1 + $0x58] sm:$0xf]
  %v73 = vld [vmem:[%s1 + $0x5c] sm:$0xf]
  %v74 = vld [vmem:[%s1 + $0x60] sm:$0xf]
  %v75 = vld [vmem:[%s1 + $0x64] sm:$0xf]
  %v76 = vld [vmem:[%s1 + $0x68] sm:$0xf]
  %v77 = vld [vmem:[%s1 + $0x6c] sm:$0xf]
  %v78 = vld [vmem:[%s1 + $0x70] sm:$0xf]
  %v79 = vld [vmem:[%s1 + $0x74] sm:$0xf]
  %v80 = vld [vmem:[%s1 + $0x78] sm:$0xf]
  %v81 = vld [vmem:[%s1 + $0x7c] sm:$0xf]
  %v114 = vunpack.c.l.b16 %v18
  %v115 = vunpack.c.h.b16 %v18
  %v116 = vunpack.c.l.b16 %v19
  %v117 = vunpack.c.h.b16 %v19
  %v118 = vunpack.c.l.b16 %v20
  %v119 = vunpack.c.h.b16 %v20
  %v120 = vunpack.c.l.b16 %v21
  %v121 = vunpack.c.h.b16 %v21
  %v122 = vunpack.c.l.b16 %v22
  %v123 = vunpack.c.h.b16 %v22
  %v124 = vunpack.c.l.b16 %v23
  %v125 = vunpack.c.h.b16 %v23
  %v126 = vunpack.c.l.b16 %v24
  %v127 = vunpack.c.h.b16 %v24
  %v128 = vunpack.c.l.b16 %v25
  %v129 = vunpack.c.h.b16 %v25
  %v130 = vunpack.c.l.b16 %v26
  %v131 = vunpack.c.h.b16 %v26
  %v132 = vunpack.c.l.b16 %v27
  %v133 = vunpack.c.h.b16 %v27
  %v134 = vunpack.c.l.b16 %v28
  %v135 = vunpack.c.h.b16 %v28
  %v136 = vunpack.c.l.b16 %v29
  %v137 = vunpack.c.h.b16 %v29
  %v138 = vunpack.c.l.b16 %v30
  %v139 = vunpack.c.h.b16 %v30
  %v140 = vunpack.c.l.b16 %v31
  %v141 = vunpack.c.h.b16 %v31
  %v142 = vunpack.c.l.b16 %v32
  %v143 = vunpack.c.h.b16 %v32
  %v144 = vunpack.c.l.b16 %v33
  %v145 = vunpack.c.h.b16 %v33
  %v146 = vunpack.c.l.b16 %v34
  %v147 = vunpack.c.h.b16 %v34
  %v148 = vunpack.c.l.b16 %v35
  %v149 = vunpack.c.h.b16 %v35
  %v150 = vunpack.c.l.b16 %v36
  %v151 = vunpack.c.h.b16 %v36
  %v152 = vunpack.c.l.b16 %v37
  %v153 = vunpack.c.h.b16 %v37
  %v154 = vunpack.c.l.b16 %v38
  %v155 = vunpack.c.h.b16 %v38
  %v156 = vunpack.c.l.b16 %v39
  %v157 = vunpack.c.h.b16 %v39
  %v158 = vunpack.c.l.b16 %v40
  %v159 = vunpack.c.h.b16 %v40
  %v160 = vunpack.c.l.b16 %v41
  %v161 = vunpack.c.h.b16 %v41
  %v162 = vunpack.c.l.b16 %v42
  %v163 = vunpack.c.h.b16 %v42
  %v164 = vunpack.c.l.b16 %v43
  %v165 = vunpack.c.h.b16 %v43
  %v166 = vunpack.c.l.b16 %v44
  %v167 = vunpack.c.h.b16 %v44
  %v168 = vunpack.c.l.b16 %v45
  %v169 = vunpack.c.h.b16 %v45
  %v170 = vunpack.c.l.b16 %v46
  %v171 = vunpack.c.h.b16 %v46
  %v172 = vunpack.c.l.b16 %v47
  %v173 = vunpack.c.h.b16 %v47
  %v174 = vunpack.c.l.b16 %v48
  %v175 = vunpack.c.h.b16 %v48
  %v176 = vunpack.c.l.b16 %v49
  %v177 = vunpack.c.h.b16 %v49
  %v178 = vpack.c.b16 %v116, %v114
  %v179 = vpack.c.b16 %v117, %v115
  %v180 = vpack.c.b16 %v120, %v118
  %v181 = vpack.c.b16 %v121, %v119
  %v182 = vpack.c.b16 %v124, %v122
  %v183 = vpack.c.b16 %v125, %v123
  %v184 = vpack.c.b16 %v128, %v126
  %v185 = vpack.c.b16 %v129, %v127
  %v186 = vpack.c.b16 %v132, %v130
  %v187 = vpack.c.b16 %v133, %v131
  %v188 = vpack.c.b16 %v136, %v134
  %v189 = vpack.c.b16 %v137, %v135
  %v190 = vpack.c.b16 %v140, %v138
  %v191 = vpack.c.b16 %v141, %v139
  %v192 = vpack.c.b16 %v144, %v142
  %v193 = vpack.c.b16 %v145, %v143
  %v194 = vpack.c.b16 %v148, %v146
  %v195 = vpack.c.b16 %v149, %v147
  %v196 = vpack.c.b16 %v152, %v150
  %v197 = vpack.c.b16 %v153, %v151
  %v198 = vpack.c.b16 %v156, %v154
  %v199 = vpack.c.b16 %v157, %v155
  %v200 = vpack.c.b16 %v160, %v158
  %v201 = vpack.c.b16 %v161, %v159
  %v202 = vpack.c.b16 %v164, %v162
  %v203 = vpack.c.b16 %v165, %v163
  %v204 = vpack.c.b16 %v168, %v166
  %v205 = vpack.c.b16 %v169, %v167
  %v206 = vpack.c.b16 %v172, %v170
  %v207 = vpack.c.b16 %v173, %v171
  %v208 = vpack.c.b16 %v176, %v174
  %v209 = vpack.c.b16 %v177, %v175
  %v274 = vunpack.c.l.b16 %v50
  %v275 = vunpack.c.l.b16 %v51
  %v276 = vunpack.c.l.b16 %v52
  %v277 = vunpack.c.l.b16 %v53
  %v278 = vunpack.c.l.b16 %v54
  %v279 = vunpack.c.l.b16 %v55
  %v280 = vunpack.c.l.b16 %v56
  %v281 = vunpack.c.l.b16 %v57
  %v282 = vunpack.c.l.b16 %v58
  %v283 = vunpack.c.l.b16 %v59
  %v284 = vunpack.c.l.b16 %v60
  %v285 = vunpack.c.l.b16 %v61
  %v286 = vunpack.c.l.b16 %v62
  %v287 = vunpack.c.l.b16 %v63
  %v288 = vunpack.c.l.b16 %v64
  %v289 = vunpack.c.l.b16 %v65
  %v290 = vunpack.c.l.b16 %v66
  %v291 = vunpack.c.l.b16 %v67
  %v292 = vunpack.c.l.b16 %v68
  %v293 = vunpack.c.l.b16 %v69
  %v294 = vunpack.c.l.b16 %v70
  %v295 = vunpack.c.l.b16 %v71
  %v296 = vunpack.c.l.b16 %v72
  %v297 = vunpack.c.l.b16 %v73
  %v298 = vunpack.c.l.b16 %v74
  %v299 = vunpack.c.l.b16 %v75
  %v300 = vunpack.c.l.b16 %v76
  %v301 = vunpack.c.l.b16 %v77
  %v302 = vunpack.c.l.b16 %v78
  %v303 = vunpack.c.l.b16 %v79
  %v304 = vunpack.c.l.b16 %v80
  %v305 = vunpack.c.l.b16 %v81
  %v306 = vpack.c.b16 %v275, %v274
  %v307 = vpack.c.b16 %v277, %v276
  %v308 = vpack.c.b16 %v279, %v278
  %v309 = vpack.c.b16 %v281, %v280
  %v310 = vpack.c.b16 %v283, %v282
  %v311 = vpack.c.b16 %v285, %v284
  %v312 = vpack.c.b16 %v287, %v286
  %v313 = vpack.c.b16 %v289, %v288
  %v314 = vpack.c.b16 %v291, %v290
  %v315 = vpack.c.b16 %v293, %v292
  %v316 = vpack.c.b16 %v295, %v294
  %v317 = vpack.c.b16 %v297, %v296
  %v318 = vpack.c.b16 %v299, %v298
  %v319 = vpack.c.b16 %v301, %v300
  %v320 = vpack.c.b16 %v303, %v302
  %v321 = vpack.c.b16 %v305, %v304
  %338 = vmatprep.subr.bf16.mxu0 0
  %339 = vmatpush1.bf16.msra.mxu0 %v306
  %340 = vmatprep.subr.bf16.mxu0 0
  %341 = vmatpush1.bf16.msra.mxu0 %v307
  %342 = vmatprep.subr.bf16.mxu0 0
  %343 = vmatpush1.bf16.msra.mxu0 %v308
  %344 = vmatprep.subr.bf16.mxu0 0
  %345 = vmatpush1.bf16.msra.mxu0 %v309
  %346 = vmatprep.subr.bf16.mxu0 0
  %347 = vmatpush1.bf16.msra.mxu0 %v310
  %348 = vmatprep.subr.bf16.mxu0 0
  %349 = vmatpush1.bf16.msra.mxu0 %v311
  %350 = vmatprep.subr.bf16.mxu0 0
  %351 = vmatpush1.bf16.msra.mxu0 %v312
  %352 = vmatprep.subr.bf16.mxu0 0
  %353 = vmatpush1.bf16.msra.mxu0 %v313
  %354 = vmatprep.subr.bf16.mxu0 0
  %355 = vmatpush1.bf16.msra.mxu0 %v314
  %356 = vmatprep.subr.bf16.mxu0 0
  %357 = vmatpush1.bf16.msra.mxu0 %v315
  %358 = vmatprep.subr.bf16.mxu0 0
  %359 = vmatpush1.bf16.msra.mxu0 %v316
  %360 = vmatprep.subr.bf16.mxu0 0
  %361 = vmatpush1.bf16.msra.mxu0 %v317
  %362 = vmatprep.subr.bf16.mxu0 0
  %363 = vmatpush1.bf16.msra.mxu0 %v318
  %364 = vmatprep.subr.bf16.mxu0 0
  %365 = vmatpush1.bf16.msra.mxu0 %v319
  %366 = vmatprep.subr.bf16.mxu0 0
  %367 = vmatpush1.bf16.msra.mxu0 %v320
  %368 = vmatprep.subr.bf16.mxu0 0
  %369 = vmatpush1.bf16.msra.mxu0 %v321
  %370 = vmatprep.mubr.bf16.mxu0 %v179
  %371 = vmatmul.mubr.bf16.gmra.mrb[0].mxu0 %v178
  %v372 = vpop.f32.mrb[0].mxu0
  %v373 = vadd.f32 0.0, %v372
  %v374 = vpop.f32.mrb[0].mxu0
  %v375 = vpop.f32.mrb[0].mxu0
  %v376 = vadd.f32 0.0, %v375
  %v377 = vpop.f32.mrb[0].mxu0
  %378 = vmatprep.mubr.bf16.mxu0 %v181
  %379 = vmatmul.mubr.bf16.gmra.mrb[0].mxu0 %v180
  %v380 = vpop.f32.mrb[0].mxu0
  %v381 = vadd.f32 0.0, %v380
  %v382 = vpop.f32.mrb[0].mxu0
  %v383 = vpop.f32.mrb[0].mxu0
  %v384 = vadd.f32 0.0, %v383
  %v385 = vpop.f32.mrb[0].mxu0
  %386 = vmatprep.mubr.bf16.mxu0 %v183
  %387 = vmatmul.mubr.bf16.gmra.mrb[0].mxu0 %v182
  %v388 = vpop.f32.mrb[0].mxu0
  %v389 = vadd.f32 0.0, %v388
  %v390 = vpop.f32.mrb[0].mxu0
  %v391 = vpop.f32.mrb[0].mxu0
  %v392 = vadd.f32 0.0, %v391
  %v393 = vpop.f32.mrb[0].mxu0
  %394 = vmatprep.mubr.bf16.mxu0 %v185
  %395 = vmatmul.mubr.bf16.gmra.mrb[0].mxu0 %v184
  %v396 = vpop.f32.mrb[0].mxu0
  %v397 = vadd.f32 0.0, %v396
  %v398 = vpop.f32.mrb[0].mxu0
  %v399 = vpop.f32.mrb[0].mxu0
  %v400 = vadd.f32 0.0, %v399
  %v401 = vpop.f32.mrb[0].mxu0
  %402 = vmatprep.mubr.bf16.mxu0 %v187
  %403 = vmatmul.mubr.bf16.gmra.mrb[0].mxu0 %v186
  %v404 = vpop.f32.mrb[0].mxu0
  %v405 = vadd.f32 0.0, %v404
  %v406 = vpop.f32.mrb[0].mxu0
  %v407 = vpop.f32.mrb[0].mxu0
  %v408 = vadd.f32 0.0, %v407
  %v409 = vpop.f32.mrb[0].mxu0
  %410 = vmatprep.mubr.bf16.mxu0 %v189
  %411 = vmatmul.mubr.bf16.gmra.mrb[0].mxu0 %v188
  %v412 = vpop.f32.mrb[0].mxu0
  %v413 = vadd.f32 0.0, %v412
  %v414 = vpop.f32.mrb[0].mxu0
  %v415 = vpop.f32.mrb[0].mxu0
  %v416 = vadd.f32 0.0, %v415
  %v417 = vpop.f32.mrb[0].mxu0
  %418 = vmatprep.mubr.bf16.mxu0 %v191
  %419 = vmatmul.mubr.bf16.gmra.mrb[0].mxu0 %v190
  %v420 = vpop.f32.mrb[0].mxu0
  %v421 = vadd.f32 0.0, %v420
  %v422 = vpop.f32.mrb[0].mxu0
  %v423 = vpop.f32.mrb[0].mxu0
  %v424 = vadd.f32 0.0, %v423
  %v425 = vpop.f32.mrb[0].mxu0
  %426 = vmatprep.mubr.bf16.mxu0 %v193
  %427 = vmatmul.mubr.bf16.gmra.mrb[0].mxu0 %v192
  %v428 = vpop.f32.mrb[0].mxu0
  %v429 = vadd.f32 0.0, %v428
  %v430 = vpop.f32.mrb[0].mxu0
  %v431 = vpop.f32.mrb[0].mxu0
  %v432 = vadd.f32 0.0, %v431
  %v433 = vpop.f32.mrb[0].mxu0
  %434 = vmatprep.mubr.bf16.mxu0 %v195
  %435 = vmatmul.mubr.bf16.gmra.mrb[0].mxu0 %v194
  %v436 = vpop.f32.mrb[0].mxu0
  %v437 = vadd.f32 0.0, %v436
  %v438 = vpop.f32.mrb[0].mxu0
  %v439 = vpop.f32.mrb[0].mxu0
  %v440 = vadd.f32 0.0, %v439
  %v441 = vpop.f32.mrb[0].mxu0
  %442 = vmatprep.mubr.bf16.mxu0 %v197
  %443 = vmatmul.mubr.bf16.gmra.mrb[0].mxu0 %v196
  %v444 = vpop.f32.mrb[0].mxu0
  %v445 = vadd.f32 0.0, %v444
  %v446 = vpop.f32.mrb[0].mxu0
  %v447 = vpop.f32.mrb[0].mxu0
  %v448 = vadd.f32 0.0, %v447
  %v449 = vpop.f32.mrb[0].mxu0
  %450 = vmatprep.mubr.bf16.mxu0 %v199
  %451 = vmatmul.mubr.bf16.gmra.mrb[0].mxu0 %v198
  %v452 = vpop.f32.mrb[0].mxu0
  %v453 = vadd.f32 0.0, %v452
  %v454 = vpop.f32.mrb[0].mxu0
  %v455 = vpop.f32.mrb[0].mxu0
  %v456 = vadd.f32 0.0, %v455
  %v457 = vpop.f32.mrb[0].mxu0
  %458 = vmatprep.mubr.bf16.mxu0 %v201
  %459 = vmatmul.mubr.bf16.gmra.mrb[0].mxu0 %v200
  %v460 = vpop.f32.mrb[0].mxu0
  %v461 = vadd.f32 0.0, %v460
  %v462 = vpop.f32.mrb[0].mxu0
  %v463 = vpop.f32.mrb[0].mxu0
  %v464 = vadd.f32 0.0, %v463
  %v465 = vpop.f32.mrb[0].mxu0
  %466 = vmatprep.mubr.bf16.mxu0 %v203
  %467 = vmatmul.mubr.bf16.gmra.mrb[0].mxu0 %v202
  %v468 = vpop.f32.mrb[0].mxu0
  %v469 = vadd.f32 0.0, %v468
  %v470 = vpop.f32.mrb[0].mxu0
  %v471 = vpop.f32.mrb[0].mxu0
  %v472 = vadd.f32 0.0, %v471
  %v473 = vpop.f32.mrb[0].mxu0
  %474 = vmatprep.mubr.bf16.mxu0 %v205
  %475 = vmatmul.mubr.bf16.gmra.mrb[0].mxu0 %v204
  %v476 = vpop.f32.mrb[0].mxu0
  %v477 = vadd.f32 0.0, %v476
  %v478 = vpop.f32.mrb[0].mxu0
  %v479 = vpop.f32.mrb[0].mxu0
  %v480 = vadd.f32 0.0, %v479
  %v481 = vpop.f32.mrb[0].mxu0
  %482 = vmatprep.mubr.bf16.mxu0 %v207
  %483 = vmatmul.mubr.bf16.gmra.mrb[0].mxu0 %v206
  %v484 = vpop.f32.mrb[0].mxu0
  %v485 = vadd.f32 0.0, %v484
  %v486 = vpop.f32.mrb[0].mxu0
  %v487 = vpop.f32.mrb[0].mxu0
  %v488 = vadd.f32 0.0, %v487
  %v489 = vpop.f32.mrb[0].mxu0
  %490 = vmatprep.mubr.bf16.mxu0 %v209
  %491 = vmatmul.mubr.bf16.gmra.mrb[0].mxu0 %v208
  %v492 = vpop.f32.mrb[0].mxu0
  %v493 = vadd.f32 0.0, %v492
  %v494 = vpop.f32.mrb[0].mxu0
  %v495 = vpop.f32.mrb[0].mxu0
  %v496 = vadd.f32 0.0, %v495
  %v497 = vpop.f32.mrb[0].mxu0
  %498 = vdwg.mxu0
  %v499 = vld [vmem:[%s2] sm:$0xff]
  %v500 = vld [vmem:[%s2 + $0x8] sm:$0xff]
  %v501 = vld [vmem:[%s2 + $0x10] sm:$0xff]
  %v502 = vld [vmem:[%s2 + $0x18] sm:$0xff]
  %v503 = vld [vmem:[%s2 + $0x20] sm:$0xff]
  %v504 = vld [vmem:[%s2 + $0x28] sm:$0xff]
  %v505 = vld [vmem:[%s2 + $0x30] sm:$0xff]
  %v506 = vld [vmem:[%s2 + $0x38] sm:$0xff]
  %v507 = vld [vmem:[%s2 + $0x40] sm:$0xff]
  %v508 = vld [vmem:[%s2 + $0x48] sm:$0xff]
  %v509 = vld [vmem:[%s2 + $0x50] sm:$0xff]
  %v510 = vld [vmem:[%s2 + $0x58] sm:$0xff]
  %v511 = vld [vmem:[%s2 + $0x60] sm:$0xff]
  %v512 = vld [vmem:[%s2 + $0x68] sm:$0xff]
  %v513 = vld [vmem:[%s2 + $0x70] sm:$0xff]
  %v514 = vld [vmem:[%s2 + $0x78] sm:$0xff]
  %v515 = vld [vmem:[%s2 + $0x80] sm:$0xff]
  %v516 = vld [vmem:[%s2 + $0x88] sm:$0xff]
  %v517 = vld [vmem:[%s2 + $0x90] sm:$0xff]
  %v518 = vld [vmem:[%s2 + $0x98] sm:$0xff]
  %v519 = vld [vmem:[%s2 + $0xa0] sm:$0xff]
  %v520 = vld [vmem:[%s2 + $0xa8] sm:$0xff]
  %v521 = vld [vmem:[%s2 + $0xb0] sm:$0xff]
  %v522 = vld [vmem:[%s2 + $0xb8] sm:$0xff]
  %v523 = vld [vmem:[%s2 + $0xc0] sm:$0xff]
  %v524 = vld [vmem:[%s2 + $0xc8] sm:$0xff]
  %v525 = vld [vmem:[%s2 + $0xd0] sm:$0xff]
  %v526 = vld [vmem:[%s2 + $0xd8] sm:$0xff]
  %v527 = vld [vmem:[%s2 + $0xe0] sm:$0xff]
  %v528 = vld [vmem:[%s2 + $0xe8] sm:$0xff]
  %v529 = vld [vmem:[%s2 + $0xf0] sm:$0xff]
  %v530 = vld [vmem:[%s2 + $0xf8] sm:$0xff]
  %532 = vset.pattern.permute.xlu0 0
  %533 = vperm.xlu0 %532, %v499
  %v534 = vpop.permute.xlu0 %533
  %537 = vset.pattern.permute.xlu0 0
  %538 = vperm.xlu0 %537, %v500
  %v539 = vpop.permute.xlu0 %538
  %542 = vset.pattern.permute.xlu0 0
  %543 = vperm.xlu0 %542, %v501
  %v544 = vpop.permute.xlu0 %543
  %547 = vset.pattern.permute.xlu0 0
  %548 = vperm.xlu0 %547, %v502
  %v549 = vpop.permute.xlu0 %548
  %552 = vset.pattern.permute.xlu0 0
  %553 = vperm.xlu0 %552, %v503
  %v554 = vpop.permute.xlu0 %553
  %557 = vset.pattern.permute.xlu0 0
  %558 = vperm.xlu0 %557, %v504
  %v559 = vpop.permute.xlu0 %558
  %562 = vset.pattern.permute.xlu0 0
  %563 = vperm.xlu0 %562, %v505
  %v564 = vpop.permute.xlu0 %563
  %567 = vset.pattern.permute.xlu0 0
  %568 = vperm.xlu0 %567, %v506
  %v569 = vpop.permute.xlu0 %568
  %572 = vset.pattern.permute.xlu0 0
  %573 = vperm.xlu0 %572, %v507
  %v574 = vpop.permute.xlu0 %573
  %577 = vset.pattern.permute.xlu0 0
  %578 = vperm.xlu0 %577, %v508
  %v579 = vpop.permute.xlu0 %578
  %582 = vset.pattern.permute.xlu0 0
  %583 = vperm.xlu0 %582, %v509
  %v584 = vpop.permute.xlu0 %583
  %587 = vset.pattern.permute.xlu0 0
  %588 = vperm.xlu0 %587, %v510
  %v589 = vpop.permute.xlu0 %588
  %592 = vset.pattern.permute.xlu0 0
  %593 = vperm.xlu0 %592, %v511
  %v594 = vpop.permute.xlu0 %593
  %597 = vset.pattern.permute.xlu0 0
  %598 = vperm.xlu0 %597, %v512
  %v599 = vpop.permute.xlu0 %598
  %602 = vset.pattern.permute.xlu0 0
  %603 = vperm.xlu0 %602, %v513
  %v604 = vpop.permute.xlu0 %603
  %607 = vset.pattern.permute.xlu0 0
  %608 = vperm.xlu0 %607, %v514
  %v609 = vpop.permute.xlu0 %608
  %612 = vset.pattern.permute.xlu0 0
  %613 = vperm.xlu0 %612, %v515
  %v614 = vpop.permute.xlu0 %613
  %617 = vset.pattern.permute.xlu0 0
  %618 = vperm.xlu0 %617, %v516
  %v619 = vpop.permute.xlu0 %618
  %622 = vset.pattern.permute.xlu0 0
  %623 = vperm.xlu0 %622, %v517
  %v624 = vpop.permute.xlu0 %623
  %627 = vset.pattern.permute.xlu0 0
  %628 = vperm.xlu0 %627, %v518
  %v629 = vpop.permute.xlu0 %628
  %632 = vset.pattern.permute.xlu0 0
  %633 = vperm.xlu0 %632, %v519
  %v634 = vpop.permute.xlu0 %633
  %637 = vset.pattern.permute.xlu0 0
  %638 = vperm.xlu0 %637, %v520
  %v639 = vpop.permute.xlu0 %638
  %642 = vset.pattern.permute.xlu0 0
  %643 = vperm.xlu0 %642, %v521
  %v644 = vpop.permute.xlu0 %643
  %647 = vset.pattern.permute.xlu0 0
  %648 = vperm.xlu0 %647, %v522
  %v649 = vpop.permute.xlu0 %648
  %652 = vset.pattern.permute.xlu0 0
  %653 = vperm.xlu0 %652, %v523
  %v654 = vpop.permute.xlu0 %653
  %657 = vset.pattern.permute.xlu0 0
  %658 = vperm.xlu0 %657, %v524
  %v659 = vpop.permute.xlu0 %658
  %662 = vset.pattern.permute.xlu0 0
  %663 = vperm.xlu0 %662, %v525
  %v664 = vpop.permute.xlu0 %663
  %667 = vset.pattern.permute.xlu0 0
  %668 = vperm.xlu0 %667, %v526
  %v669 = vpop.permute.xlu0 %668
  %672 = vset.pattern.permute.xlu0 0
  %673 = vperm.xlu0 %672, %v527
  %v674 = vpop.permute.xlu0 %673
  %677 = vset.pattern.permute.xlu0 0
  %678 = vperm.xlu0 %677, %v528
  %v679 = vpop.permute.xlu0 %678
  %682 = vset.pattern.permute.xlu0 0
  %683 = vperm.xlu0 %682, %v529
  %v684 = vpop.permute.xlu0 %683
  %687 = vset.pattern.permute.xlu0 0
  %688 = vperm.xlu0 %687, %v530
  %v689 = vpop.permute.xlu0 %688
  %v691 = vmul.f32 %v373, %v534
  %v692 = vmul.f32 %v376, %v539
  %v693 = vmul.f32 %v381, %v544
  %v694 = vmul.f32 %v384, %v549
  %v695 = vmul.f32 %v389, %v554
  %v696 = vmul.f32 %v392, %v559
  %v697 = vmul.f32 %v397, %v564
  %v698 = vmul.f32 %v400, %v569
  %v699 = vmul.f32 %v405, %v574
  %v700 = vmul.f32 %v408, %v579
  %v701 = vmul.f32 %v413, %v584
  %v702 = vmul.f32 %v416, %v589
  %v703 = vmul.f32 %v421, %v594
  %v704 = vmul.f32 %v424, %v599
  %v705 = vmul.f32 %v429, %v604
  %v706 = vmul.f32 %v432, %v609
  %v707 = vmul.f32 %v437, %v614
  %v708 = vmul.f32 %v440, %v619
  %v709 = vmul.f32 %v445, %v624
  %v710 = vmul.f32 %v448, %v629
  %v711 = vmul.f32 %v453, %v634
  %v712 = vmul.f32 %v456, %v639
  %v713 = vmul.f32 %v461, %v644
  %v714 = vmul.f32 %v464, %v649
  %v715 = vmul.f32 %v469, %v654
  %v716 = vmul.f32 %v472, %v659
  %v717 = vmul.f32 %v477, %v664
  %v718 = vmul.f32 %v480, %v669
  %v719 = vmul.f32 %v485, %v674
  %v720 = vmul.f32 %v488, %v679
  %v721 = vmul.f32 %v493, %v684
  %v722 = vmul.f32 %v496, %v689
  %v723 = vld [vmem:[%s3] sm:$0x1]
  %v725 = vlaneseq
  %v726 = vshrl.u32 %v725, 7
  %v727 = vsub.s32 0, %v726
  %v728 = vrot.slane %v723, %v727
  %v730 = vadd.f32 %v691, %v728
  %v731 = vadd.f32 %v692, %v728
  %v732 = vadd.f32 %v693, %v728
  %v733 = vadd.f32 %v694, %v728
  %v734 = vadd.f32 %v695, %v728
  %v735 = vadd.f32 %v696, %v728
  %v736 = vadd.f32 %v697, %v728
  %v737 = vadd.f32 %v698, %v728
  %v738 = vadd.f32 %v699, %v728
  %v739 = vadd.f32 %v700, %v728
  %v740 = vadd.f32 %v701, %v728
  %v741 = vadd.f32 %v702, %v728
  %v742 = vadd.f32 %v703, %v728
  %v743 = vadd.f32 %v704, %v728
  %v744 = vadd.f32 %v705, %v728
  %v745 = vadd.f32 %v706, %v728
  %v746 = vadd.f32 %v707, %v728
  %v747 = vadd.f32 %v708, %v728
  %v748 = vadd.f32 %v709, %v728
  %v749 = vadd.f32 %v710, %v728
  %v750 = vadd.f32 %v711, %v728
  %v751 = vadd.f32 %v712, %v728
  %v752 = vadd.f32 %v713, %v728
  %v753 = vadd.f32 %v714, %v728
  %v754 = vadd.f32 %v715, %v728
  %v755 = vadd.f32 %v716, %v728
  %v756 = vadd.f32 %v717, %v728
  %v757 = vadd.f32 %v718, %v728
  %v758 = vadd.f32 %v719, %v728
  %v759 = vadd.f32 %v720, %v728
  %v760 = vadd.f32 %v721, %v728
  %v761 = vadd.f32 %v722, %v728
  %vm762 = vcmask 130048
  %763 = vst.msk [vmem:[%s4] sm:$0xff] %vm762, %v730
  %764 = vst.msk [vmem:[%s4 + $0x8] sm:$0xff] %vm762, %v731
  %765 = vst.msk [vmem:[%s4 + $0x10] sm:$0xff] %vm762, %v732
  %766 = vst.msk [vmem:[%s4 + $0x18] sm:$0xff] %vm762, %v733
  %767 = vst.msk [vmem:[%s4 + $0x20] sm:$0xff] %vm762, %v734
  %768 = vst.msk [vmem:[%s4 + $0x28] sm:$0xff] %vm762, %v735
  %769 = vst.msk [vmem:[%s4 + $0x30] sm:$0xff] %vm762, %v736
  %770 = vst.msk [vmem:[%s4 + $0x38] sm:$0xff] %vm762, %v737
  %771 = vst.msk [vmem:[%s4 + $0x40] sm:$0xff] %vm762, %v738
  %772 = vst.msk [vmem:[%s4 + $0x48] sm:$0xff] %vm762, %v739
  %773 = vst.msk [vmem:[%s4 + $0x50] sm:$0xff] %vm762, %v740
  %774 = vst.msk [vmem:[%s4 + $0x58] sm:$0xff] %vm762, %v741
  %775 = vst.msk [vmem:[%s4 + $0x60] sm:$0xff] %vm762, %v742
  %776 = vst.msk [vmem:[%s4 + $0x68] sm:$0xff] %vm762, %v743
  %777 = vst.msk [vmem:[%s4 + $0x70] sm:$0xff] %vm762, %v744
  %778 = vst.msk [vmem:[%s4 + $0x78] sm:$0xff] %vm762, %v745
  %779 = vst.msk [vmem:[%s4 + $0x80] sm:$0xff] %vm762, %v746
  %780 = vst.msk [vmem:[%s4 + $0x88] sm:$0xff] %vm762, %v747
  %781 = vst.msk [vmem:[%s4 + $0x90] sm:$0xff] %vm762, %v748
  %782 = vst.msk [vmem:[%s4 + $0x98] sm:$0xff] %vm762, %v749
  %783 = vst.msk [vmem:[%s4 + $0xa0] sm:$0xff] %vm762, %v750
  %784 = vst.msk [vmem:[%s4 + $0xa8] sm:$0xff] %vm762, %v751
  %785 = vst.msk [vmem:[%s4 + $0xb0] sm:$0xff] %vm762, %v752
  %786 = vst.msk [vmem:[%s4 + $0xb8] sm:$0xff] %vm762, %v753
  %787 = vst.msk [vmem:[%s4 + $0xc0] sm:$0xff] %vm762, %v754
  %788 = vst.msk [vmem:[%s4 + $0xc8] sm:$0xff] %vm762, %v755
  %789 = vst.msk [vmem:[%s4 + $0xd0] sm:$0xff] %vm762, %v756
  %790 = vst.msk [vmem:[%s4 + $0xd8] sm:$0xff] %vm762, %v757
  %791 = vst.msk [vmem:[%s4 + $0xe0] sm:$0xff] %vm762, %v758
  %792 = vst.msk [vmem:[%s4 + $0xe8] sm:$0xff] %vm762, %v759
  %793 = vst.msk [vmem:[%s4 + $0xf0] sm:$0xff] %vm762, %v760
  %794 = vst.msk [vmem:[%s4 + $0xf8] sm:$0xff] %vm762, %v761
  // Predicated region
  $region18: #{tpu_custom_call.1} parent=0 // pred_check
    _
  $region19: #{tpu_custom_call.1} parent=0 // pred_check_branch
    %796 = sbr.rel (0) target = $region21
  $region20: #{tpu_custom_call.1} parent=0 // pred_region
    _
  $region21: #{tpu_custom_call.1} parent=0 // pred_fallthru
    _
  // Predicated region
  $region22: #{tpu_custom_call.1} parent=0 // pred_check
    _
  $region23: #{tpu_custom_call.1} parent=0 // pred_check_branch
    %798 = sbr.rel (0) target = $region25
  $region24: #{tpu_custom_call.1} parent=0 // pred_region
    _
  $region25: #{tpu_custom_call.1} parent=0 // pred_fallthru
    _

</llo_original>
